<compile_context>
chip_gen: v6e
topology: v6e:2x2x1
jax: 0.10.0
libtpu: 0.0.40
codegen_flags: <defaults>
</compile_context>

<pallas_src>
import functools

import jax
import jax.numpy as jnp
from jax import lax
from jax.experimental import pallas as pl
from jax.experimental.pallas import tpu as pltpu

# Module constants (from bigram.py)
BLOCK_SIZE = 128
DROPOUT = 0.2                         # nn.Dropout(0.2): identity in eval mode
N_HEAD = 4
BATCH_SIZE_CONST = 32
N_EMBED = N_HEAD * BATCH_SIZE_CONST   # 128
HEAD_SIZE = N_EMBED // N_HEAD         # 32


def _fused_heads_kernel(x_ref, wk_ref, wq_ref, wv_ref, o_ref, *, n_heads):
    # x_ref: (Bb, T, C); w*_ref: (C, NH*H); o_ref: (Bb, T, NH*H)
    Bb, T, C = x_ref.shape
    nhh = wk_ref.shape[1]
    H = nhh // n_heads

    # MXU operands in bf16 (f32 accumulation); mask/softmax stay in f32.
    wk = wk_ref[...].astype(jnp.bfloat16)
    wq = wq_ref[...].astype(jnp.bfloat16)
    wv = wv_ref[...].astype(jnp.bfloat16)

    # PyTorch Head scales by C ** -0.5 (C = n_embed = x.shape[-1]), not head_size.
    scale = jnp.float32(C) ** jnp.float32(-0.5)

    # Causal mask — hoisted out of the per-batch / per-head loops.
    row = lax.broadcasted_iota(jnp.int32, (T, T), 0)
    col = lax.broadcasted_iota(jnp.int32, (T, T), 1)
    causal = row >= col

    for b in range(Bb):                        # static unroll, Bb is small
        xb = x_ref[b].astype(jnp.bfloat16)     # (T, C)
        # One x load feeds all heads: (T,C)@(C,NH*H) -> full 128-wide MXU N-dim.
        kb = jnp.dot(xb, wk, preferred_element_type=jnp.float32)            # (T, NH*H)
        # Scale q (T*NH*H elems) instead of wei (NH*T*T elems): 4x fewer VPU muls.
        qb = jnp.dot(xb, wq, preferred_element_type=jnp.float32) * scale
        vb = jnp.dot(xb, wv, preferred_element_type=jnp.float32)

        head_outs = []
        for h in range(n_heads):               # static unroll
            sl = slice(h * H, (h + 1) * H)
            qh = qb[:, sl].astype(jnp.bfloat16)                             # (T, H)
            kh = kb[:, sl].astype(jnp.bfloat16)
            vh = vb[:, sl].astype(jnp.bfloat16)

            # q @ k^T without materializing a transpose: contract last dims.
            s = lax.dot_general(qh, kh, (((1,), (1,)), ((), ())),
                                preferred_element_type=jnp.float32)         # (T, T)

            # Causal softmax (f32). Mask with a large finite value and re-zero
            # after exp: identical to PyTorch's -inf mask here, and NaN-proof.
            s = jnp.where(causal, s, jnp.float32(-1e30))
            m = jnp.max(s, axis=-1, keepdims=True)
            p = jnp.exp(s - m)
            p = jnp.where(causal, p, jnp.float32(0.0))
            denom = jnp.sum(p, axis=-1, keepdims=True)
            p = p * pl.reciprocal(denom, approx=True)   # EUP slot, ~free

            # TODO(synk): nn.Dropout(0.2) skipped — eval/inference mode (identity).
            head_outs.append(jnp.dot(p.astype(jnp.bfloat16), vh,
                                     preferred_element_type=jnp.float32))   # (T, H)

        # Single lane-dense (T, NH*H) store per batch element (no masked vst).
        o_ref[b] = jnp.concatenate(head_outs, axis=-1).astype(o_ref.dtype)


def _pick_block_b(B):
    # Fold several batch elements per grid step (amortize ~0.35us/step), but keep
    # >= 2 grid steps when possible so both v7x TensorCores get work.
    for bb in (8, 4, 2):
        if B % bb == 0 and B // bb >= 2:
            return bb
    return 1


def multi_head_forward(x, wk_t, wq_t, wv_t, *, n_heads=N_HEAD, block_b=None):
    """Fused forward of `n_heads` independent PyTorch `Head`s (eval mode).

    x: (B, T, C) f32. w*_t: (C, n_heads*H) f32 — each head's nn.Linear weight,
    pre-transposed to (C, H) and concatenated along dim 1. Returns
    (B, T, n_heads*H); out[..., h*H:(h+1)*H] == Head_h.forward(x).
    """
    B, T, C = x.shape
    nhh = wk_t.shape[1]
    assert nhh % n_heads == 0
    assert T % 8 == 0, "T must be a multiple of 8 (sublane tiling)"
    if block_b is None:
        block_b = _pick_block_b(B)
    assert B % block_b == 0
    grid = (B // block_b,)

    kernel = functools.partial(_fused_heads_kernel, n_heads=n_heads)
    return pl.pallas_call(
        kernel,
        out_shape=jax.ShapeDtypeStruct((B, T, nhh), jnp.float32),
        grid_spec=pltpu.PrefetchScalarGridSpec(
            num_scalar_prefetch=0,
            grid=grid,
            in_specs=[
                pl.BlockSpec((block_b, T, C), lambda i: (i, 0, 0)),
                pl.BlockSpec((C, nhh), lambda i: (0, 0)),
                pl.BlockSpec((C, nhh), lambda i: (0, 0)),
                pl.BlockSpec((C, nhh), lambda i: (0, 0)),
            ],
            out_specs=pl.BlockSpec((block_b, T, nhh), lambda i: (i, 0, 0)),
        ),
        compiler_params=pltpu.CompilerParams(
            dimension_semantics=("parallel",)),
    )(x, wk_t, wq_t, wv_t)


def head_forward(x, wk_t, wq_t, wv_t):
    """Single PyTorch Head.forward (eval mode). w*_t: (C, head_size).
    Prefer multi_head_forward (fuses all heads -> lane-dense 128-wide output)."""
    return multi_head_forward(x, wk_t, wq_t, wv_t, n_heads=1)


def reference_head(x, wk_t, wq_t, wv_t):
    """Pure-JAX f32 reference matching the PyTorch Head.forward (eval mode)."""
    B, T, C = x.shape
    k = x @ wk_t
    q = x @ wq_t
    v = x @ wv_t
    wei = (q @ jnp.swapaxes(k, -2, -1)) * (C ** -0.5)
    tril = jnp.tril(jnp.ones((T, T), jnp.float32))
    wei = jnp.where(tril == 0, -jnp.inf, wei)
    wei = jax.nn.softmax(wei, axis=-1)
    return wei @ v


if __name__ == "__main__":
    B, T, C = 2, 16, N_EMBED          # small demo shapes; C = n_embed = 128
    H = HEAD_SIZE                     # 32; N_HEAD * H = 128 (lane-dense output)

    key = jax.random.PRNGKey(0)
    kx, *wkeys = jax.random.split(key, 1 + 3 * N_HEAD)

    x = jax.random.normal(kx, (B, T, C), dtype=jnp.float32)
    bound = 1.0 / (C ** 0.5)          # PyTorch nn.Linear default init range
    per_head = [
        tuple(jax.random.uniform(wkeys[3 * h + j], (C, H), jnp.float32,
                                 -bound, bound) for j in range(3))
        for h in range(N_HEAD)
    ]
    # Concatenate the 4 heads' (C, H) weights into (C, 128) slabs.
    wk_t = jnp.concatenate([w[0] for w in per_head], axis=1)
    wq_t = jnp.concatenate([w[1] for w in per_head], axis=1)
    wv_t = jnp.concatenate([w[2] for w in per_head], axis=1)

    out = multi_head_forward(x, wk_t, wq_t, wv_t)
    jax.block_until_ready(out)
    assert out.shape == (B, T, N_HEAD * H)

    # Each head's slice must match the exact (f32) PyTorch Head.forward.
    ref = jnp.concatenate(
        [reference_head(x, *per_head[h]) for h in range(N_HEAD)], axis=-1)
    # bf16 MXU operands inside the kernel -> bf16-level tolerance.
    assert jnp.allclose(out, ref, atol=2e-2, rtol=2e-2), "mismatch vs reference"

    # Single-head path: the original module's exact signature / output shape.
    out1 = head_forward(x, *per_head[0])
    jax.block_until_ready(out1)
    assert out1.shape == (B, T, H)
    assert jnp.allclose(out1, reference_head(x, *per_head[0]),
                        atol=2e-2, rtol=2e-2), "single-head mismatch"

    print("KERNEL_OK")
</pallas_src>

<mosaic_0001>
module attributes {stable_mosaic.version = 11 : i64} {
  func.func @_fused_heads_kernel(%arg0: i32, %arg1: memref<1x16x128xf32, #tpu.memory_space<vmem>>, %arg2: memref<128x128xf32, #tpu.memory_space<vmem>>, %arg3: memref<128x128xf32, #tpu.memory_space<vmem>>, %arg4: memref<128x128xf32, #tpu.memory_space<vmem>>, %arg5: memref<1x16x128xf32, #tpu.memory_space<vmem>>) attributes {dimension_semantics = [#tpu.dimension_semantics<parallel>], iteration_bounds = array<i64: 2>, scalar_prefetch = 0 : i64, scratch_operands = 0 : i64, tpu.core_type = #tpu.core_type<tc>, window_params = [{transform_indices = @transform_0, window_bounds = array<i64: 1, 16, 128>}, {pipeline_mode = #tpu.pipeline_mode<synchronous>, transform_indices = @transform_1, window_bounds = array<i64: 128, 128>}, {pipeline_mode = #tpu.pipeline_mode<synchronous>, transform_indices = @transform_2, window_bounds = array<i64: 128, 128>}, {pipeline_mode = #tpu.pipeline_mode<synchronous>, transform_indices = @transform_3, window_bounds = array<i64: 128, 128>}, {transform_indices = @transform_4, window_bounds = array<i64: 1, 16, 128>}]} {
    %c0 = arith.constant 0 : index
    %c0_0 = arith.constant 0 : index
    %0 = vector.load %arg2[%c0, %c0_0] : memref<128x128xf32, #tpu.memory_space<vmem>>, vector<128x128xf32>
    %1 = arith.truncf %0 : vector<128x128xf32> to vector<128x128xbf16>
    %c0_1 = arith.constant 0 : index
    %c0_2 = arith.constant 0 : index
    %2 = vector.load %arg3[%c0_1, %c0_2] : memref<128x128xf32, #tpu.memory_space<vmem>>, vector<128x128xf32>
    %3 = arith.truncf %2 : vector<128x128xf32> to vector<128x128xbf16>
    %c0_3 = arith.constant 0 : index
    %c0_4 = arith.constant 0 : index
    %4 = vector.load %arg4[%c0_3, %c0_4] : memref<128x128xf32, #tpu.memory_space<vmem>>, vector<128x128xf32>
    %5 = arith.truncf %4 : vector<128x128xf32> to vector<128x128xbf16>
    %cst = arith.constant 1.280000e+02 : f32
    %cst_5 = arith.constant -5.000000e-01 : f32
    %6 = math.powf %cst, %cst_5 : f32
    %7 = tpu.iota {dimensions = array<i32: 0>} : vector<16x16xi32>
    %8 = tpu.iota {dimensions = array<i32: 1>} : vector<16x16xi32>
    %9 = arith.cmpi sge, %7, %8 : vector<16x16xi32>
    %c0_6 = arith.constant 0 : index
    %c0_7 = arith.constant 0 : index
    %c0_8 = arith.constant 0 : index
    %10 = vector.load %arg1[%c0_6, %c0_7, %c0_8] : memref<1x16x128xf32, #tpu.memory_space<vmem>>, vector<1x16x128xf32>
    %11 = vector.shape_cast %10 : vector<1x16x128xf32> to vector<16x128xf32>
    %12 = arith.truncf %11 : vector<16x128xf32> to vector<16x128xbf16>
    %cst_9 = arith.constant dense<0.000000e+00> : vector<16x128xf32>
    %13 = tpu.matmul %12, %1, %cst_9 {dimension_numbers = #tpu.dot_dimension_numbers<[1], [0], [0], [1], [0, 0, 1, 1], [], []>} : vector<16x128xbf16>, vector<128x128xbf16>, vector<16x128xf32> -> vector<16x128xf32>
    %cst_10 = arith.constant dense<0.000000e+00> : vector<16x128xf32>
    %14 = tpu.matmul %12, %3, %cst_10 {dimension_numbers = #tpu.dot_dimension_numbers<[1], [0], [0], [1], [0, 0, 1, 1], [], []>} : vector<16x128xbf16>, vector<128x128xbf16>, vector<16x128xf32> -> vector<16x128xf32>
    %15 = vector.broadcast %6 : f32 to vector<16x128xf32>
    %16 = arith.mulf %14, %15 : vector<16x128xf32>
    %cst_11 = arith.constant dense<0.000000e+00> : vector<16x128xf32>
    %17 = tpu.matmul %12, %5, %cst_11 {dimension_numbers = #tpu.dot_dimension_numbers<[1], [0], [0], [1], [0, 0, 1, 1], [], []>} : vector<16x128xbf16>, vector<128x128xbf16>, vector<16x128xf32> -> vector<16x128xf32>
    %18 = vector.extract_strided_slice %16 {offsets = [0, 0], sizes = [16, 32], strides = [1, 1]} : vector<16x128xf32> to vector<16x32xf32>
    %19 = arith.truncf %18 : vector<16x32xf32> to vector<16x32xbf16>
    %20 = vector.extract_strided_slice %13 {offsets = [0, 0], sizes = [16, 32], strides = [1, 1]} : vector<16x128xf32> to vector<16x32xf32>
    %21 = arith.truncf %20 : vector<16x32xf32> to vector<16x32xbf16>
    %22 = vector.extract_strided_slice %17 {offsets = [0, 0], sizes = [16, 32], strides = [1, 1]} : vector<16x128xf32> to vector<16x32xf32>
    %23 = arith.truncf %22 : vector<16x32xf32> to vector<16x32xbf16>
    %cst_12 = arith.constant dense<0.000000e+00> : vector<16x16xf32>
    %24 = tpu.matmul %19, %21, %cst_12 {dimension_numbers = #tpu.dot_dimension_numbers<[1], [1], [0], [0], [0, 0, 1, 0], [], []>} : vector<16x32xbf16>, vector<16x32xbf16>, vector<16x16xf32> -> vector<16x16xf32>
    %cst_13 = arith.constant -1.000000e+30 : f32
    %25 = vector.broadcast %cst_13 : f32 to vector<16x16xf32>
    %26 = arith.select %9, %24, %25 : vector<16x16xi1>, vector<16x16xf32>
    %cst_14 = arith.constant dense<0xFF800000> : vector<16xf32>
    %27 = vector.multi_reduction <maximumf>, %26, %cst_14 [1] : vector<16x16xf32> to vector<16xf32>
    %28 = vector.shape_cast %27 : vector<16xf32> to vector<16x1xf32>
    %29 = vector.broadcast %28 : vector<16x1xf32> to vector<16x16xf32>
    %30 = arith.subf %26, %29 : vector<16x16xf32>
    %31 = math.exp %30 : vector<16x16xf32>
    %cst_15 = arith.constant 0.000000e+00 : f32
    %32 = vector.broadcast %cst_15 : f32 to vector<16x16xf32>
    %33 = arith.select %9, %31, %32 : vector<16x16xi1>, vector<16x16xf32>
    %cst_16 = arith.constant dense<0.000000e+00> : vector<16xf32>
    %34 = vector.multi_reduction <add>, %33, %cst_16 [1] : vector<16x16xf32> to vector<16xf32>
    %35 = vector.shape_cast %34 : vector<16xf32> to vector<16x1xf32>
    %36 = tpu.reciprocal %35 {approx = true} : vector<16x1xf32> -> vector<16x1xf32>
    %37 = vector.broadcast %36 : vector<16x1xf32> to vector<16x16xf32>
    %38 = arith.mulf %33, %37 : vector<16x16xf32>
    %39 = arith.truncf %38 : vector<16x16xf32> to vector<16x16xbf16>
    %cst_17 = arith.constant dense<0.000000e+00> : vector<16x32xf32>
    %40 = tpu.matmul %39, %23, %cst_17 {dimension_numbers = #tpu.dot_dimension_numbers<[1], [0], [0], [1], [0, 0, 1, 1], [], []>} : vector<16x16xbf16>, vector<16x32xbf16>, vector<16x32xf32> -> vector<16x32xf32>
    %41 = vector.extract_strided_slice %16 {offsets = [0, 32], sizes = [16, 32], strides = [1, 1]} : vector<16x128xf32> to vector<16x32xf32>
    %42 = arith.truncf %41 : vector<16x32xf32> to vector<16x32xbf16>
    %43 = vector.extract_strided_slice %13 {offsets = [0, 32], sizes = [16, 32], strides = [1, 1]} : vector<16x128xf32> to vector<16x32xf32>
    %44 = arith.truncf %43 : vector<16x32xf32> to vector<16x32xbf16>
    %45 = vector.extract_strided_slice %17 {offsets = [0, 32], sizes = [16, 32], strides = [1, 1]} : vector<16x128xf32> to vector<16x32xf32>
    %46 = arith.truncf %45 : vector<16x32xf32> to vector<16x32xbf16>
    %cst_18 = arith.constant dense<0.000000e+00> : vector<16x16xf32>
    %47 = tpu.matmul %42, %44, %cst_18 {dimension_numbers = #tpu.dot_dimension_numbers<[1], [1], [0], [0], [0, 0, 1, 0], [], []>} : vector<16x32xbf16>, vector<16x32xbf16>, vector<16x16xf32> -> vector<16x16xf32>
    %cst_19 = arith.constant -1.000000e+30 : f32
    %48 = vector.broadcast %cst_19 : f32 to vector<16x16xf32>
    %49 = arith.select %9, %47, %48 : vector<16x16xi1>, vector<16x16xf32>
    %cst_20 = arith.constant dense<0xFF800000> : vector<16xf32>
    %50 = vector.multi_reduction <maximumf>, %49, %cst_20 [1] : vector<16x16xf32> to vector<16xf32>
    %51 = vector.shape_cast %50 : vector<16xf32> to vector<16x1xf32>
    %52 = vector.broadcast %51 : vector<16x1xf32> to vector<16x16xf32>
    %53 = arith.subf %49, %52 : vector<16x16xf32>
    %54 = math.exp %53 : vector<16x16xf32>
    %cst_21 = arith.constant 0.000000e+00 : f32
    %55 = vector.broadcast %cst_21 : f32 to vector<16x16xf32>
    %56 = arith.select %9, %54, %55 : vector<16x16xi1>, vector<16x16xf32>
    %cst_22 = arith.constant dense<0.000000e+00> : vector<16xf32>
    %57 = vector.multi_reduction <add>, %56, %cst_22 [1] : vector<16x16xf32> to vector<16xf32>
    %58 = vector.shape_cast %57 : vector<16xf32> to vector<16x1xf32>
    %59 = tpu.reciprocal %58 {approx = true} : vector<16x1xf32> -> vector<16x1xf32>
    %60 = vector.broadcast %59 : vector<16x1xf32> to vector<16x16xf32>
    %61 = arith.mulf %56, %60 : vector<16x16xf32>
    %62 = arith.truncf %61 : vector<16x16xf32> to vector<16x16xbf16>
    %cst_23 = arith.constant dense<0.000000e+00> : vector<16x32xf32>
    %63 = tpu.matmul %62, %46, %cst_23 {dimension_numbers = #tpu.dot_dimension_numbers<[1], [0], [0], [1], [0, 0, 1, 1], [], []>} : vector<16x16xbf16>, vector<16x32xbf16>, vector<16x32xf32> -> vector<16x32xf32>
    %64 = vector.extract_strided_slice %16 {offsets = [0, 64], sizes = [16, 32], strides = [1, 1]} : vector<16x128xf32> to vector<16x32xf32>
    %65 = arith.truncf %64 : vector<16x32xf32> to vector<16x32xbf16>
    %66 = vector.extract_strided_slice %13 {offsets = [0, 64], sizes = [16, 32], strides = [1, 1]} : vector<16x128xf32> to vector<16x32xf32>
    %67 = arith.truncf %66 : vector<16x32xf32> to vector<16x32xbf16>
    %68 = vector.extract_strided_slice %17 {offsets = [0, 64], sizes = [16, 32], strides = [1, 1]} : vector<16x128xf32> to vector<16x32xf32>
    %69 = arith.truncf %68 : vector<16x32xf32> to vector<16x32xbf16>
    %cst_24 = arith.constant dense<0.000000e+00> : vector<16x16xf32>
    %70 = tpu.matmul %65, %67, %cst_24 {dimension_numbers = #tpu.dot_dimension_numbers<[1], [1], [0], [0], [0, 0, 1, 0], [], []>} : vector<16x32xbf16>, vector<16x32xbf16>, vector<16x16xf32> -> vector<16x16xf32>
    %cst_25 = arith.constant -1.000000e+30 : f32
    %71 = vector.broadcast %cst_25 : f32 to vector<16x16xf32>
    %72 = arith.select %9, %70, %71 : vector<16x16xi1>, vector<16x16xf32>
    %cst_26 = arith.constant dense<0xFF800000> : vector<16xf32>
    %73 = vector.multi_reduction <maximumf>, %72, %cst_26 [1] : vector<16x16xf32> to vector<16xf32>
    %74 = vector.shape_cast %73 : vector<16xf32> to vector<16x1xf32>
    %75 = vector.broadcast %74 : vector<16x1xf32> to vector<16x16xf32>
    %76 = arith.subf %72, %75 : vector<16x16xf32>
    %77 = math.exp %76 : vector<16x16xf32>
    %cst_27 = arith.constant 0.000000e+00 : f32
    %78 = vector.broadcast %cst_27 : f32 to vector<16x16xf32>
    %79 = arith.select %9, %77, %78 : vector<16x16xi1>, vector<16x16xf32>
    %cst_28 = arith.constant dense<0.000000e+00> : vector<16xf32>
    %80 = vector.multi_reduction <add>, %79, %cst_28 [1] : vector<16x16xf32> to vector<16xf32>
    %81 = vector.shape_cast %80 : vector<16xf32> to vector<16x1xf32>
    %82 = tpu.reciprocal %81 {approx = true} : vector<16x1xf32> -> vector<16x1xf32>
    %83 = vector.broadcast %82 : vector<16x1xf32> to vector<16x16xf32>
    %84 = arith.mulf %79, %83 : vector<16x16xf32>
    %85 = arith.truncf %84 : vector<16x16xf32> to vector<16x16xbf16>
    %cst_29 = arith.constant dense<0.000000e+00> : vector<16x32xf32>
    %86 = tpu.matmul %85, %69, %cst_29 {dimension_numbers = #tpu.dot_dimension_numbers<[1], [0], [0], [1], [0, 0, 1, 1], [], []>} : vector<16x16xbf16>, vector<16x32xbf16>, vector<16x32xf32> -> vector<16x32xf32>
    %87 = vector.extract_strided_slice %16 {offsets = [0, 96], sizes = [16, 32], strides = [1, 1]} : vector<16x128xf32> to vector<16x32xf32>
    %88 = arith.truncf %87 : vector<16x32xf32> to vector<16x32xbf16>
    %89 = vector.extract_strided_slice %13 {offsets = [0, 96], sizes = [16, 32], strides = [1, 1]} : vector<16x128xf32> to vector<16x32xf32>
    %90 = arith.truncf %89 : vector<16x32xf32> to vector<16x32xbf16>
    %91 = vector.extract_strided_slice %17 {offsets = [0, 96], sizes = [16, 32], strides = [1, 1]} : vector<16x128xf32> to vector<16x32xf32>
    %92 = arith.truncf %91 : vector<16x32xf32> to vector<16x32xbf16>
    %cst_30 = arith.constant dense<0.000000e+00> : vector<16x16xf32>
    %93 = tpu.matmul %88, %90, %cst_30 {dimension_numbers = #tpu.dot_dimension_numbers<[1], [1], [0], [0], [0, 0, 1, 0], [], []>} : vector<16x32xbf16>, vector<16x32xbf16>, vector<16x16xf32> -> vector<16x16xf32>
    %cst_31 = arith.constant -1.000000e+30 : f32
    %94 = vector.broadcast %cst_31 : f32 to vector<16x16xf32>
    %95 = arith.select %9, %93, %94 : vector<16x16xi1>, vector<16x16xf32>
    %cst_32 = arith.constant dense<0xFF800000> : vector<16xf32>
    %96 = vector.multi_reduction <maximumf>, %95, %cst_32 [1] : vector<16x16xf32> to vector<16xf32>
    %97 = vector.shape_cast %96 : vector<16xf32> to vector<16x1xf32>
    %98 = vector.broadcast %97 : vector<16x1xf32> to vector<16x16xf32>
    %99 = arith.subf %95, %98 : vector<16x16xf32>
    %100 = math.exp %99 : vector<16x16xf32>
    %cst_33 = arith.constant 0.000000e+00 : f32
    %101 = vector.broadcast %cst_33 : f32 to vector<16x16xf32>
    %102 = arith.select %9, %100, %101 : vector<16x16xi1>, vector<16x16xf32>
    %cst_34 = arith.constant dense<0.000000e+00> : vector<16xf32>
    %103 = vector.multi_reduction <add>, %102, %cst_34 [1] : vector<16x16xf32> to vector<16xf32>
    %104 = vector.shape_cast %103 : vector<16xf32> to vector<16x1xf32>
    %105 = tpu.reciprocal %104 {approx = true} : vector<16x1xf32> -> vector<16x1xf32>
    %106 = vector.broadcast %105 : vector<16x1xf32> to vector<16x16xf32>
    %107 = arith.mulf %102, %106 : vector<16x16xf32>
    %108 = arith.truncf %107 : vector<16x16xf32> to vector<16x16xbf16>
    %cst_35 = arith.constant dense<0.000000e+00> : vector<16x32xf32>
    %109 = tpu.matmul %108, %92, %cst_35 {dimension_numbers = #tpu.dot_dimension_numbers<[1], [0], [0], [1], [0, 0, 1, 1], [], []>} : vector<16x16xbf16>, vector<16x32xbf16>, vector<16x32xf32> -> vector<16x32xf32>
    %110 = tpu.concatenate %40, %63, %86, %109 in 1 : vector<16x32xf32>, vector<16x32xf32>, vector<16x32xf32>, vector<16x32xf32> -> vector<16x128xf32>
    %c0_36 = arith.constant 0 : index
    %c0_37 = arith.constant 0 : index
    %c0_38 = arith.constant 0 : index
    %111 = vector.load %arg5[%c0_36, %c0_37, %c0_38] : memref<1x16x128xf32, #tpu.memory_space<vmem>>, vector<1x16x128xf32>
    %112 = vector.shape_cast %111 : vector<1x16x128xf32> to vector<16x128xf32>
    %113 = vector.shape_cast %110 : vector<16x128xf32> to vector<1x16x128xf32>
    tpu.vector_store %arg5[%c0_36, %c0_37, %c0_38], %113 {strides = array<i32>} : memref<1x16x128xf32, #tpu.memory_space<vmem>>, vector<1x16x128xf32>,
    return
  }
  func.func @transform_0(%arg0: i32) -> (i32, i32, i32) {
    %c0_i32 = arith.constant 0 : i32
    %c0_i32_0 = arith.constant 0 : i32
    %c0_i32_1 = arith.constant 0 : i32
    return %arg0, %c0_i32, %c0_i32_0 : i32, i32, i32
  }
  func.func @transform_1(%arg0: i32) -> (i32, i32) {
    %c0_i32 = arith.constant 0 : i32
    %c0_i32_0 = arith.constant 0 : i32
    %c0_i32_1 = arith.constant 0 : i32
    return %c0_i32, %c0_i32_0 : i32, i32
  }
  func.func @transform_2(%arg0: i32) -> (i32, i32) {
    %c0_i32 = arith.constant 0 : i32
    %c0_i32_0 = arith.constant 0 : i32
    %c0_i32_1 = arith.constant 0 : i32
    return %c0_i32, %c0_i32_0 : i32, i32
  }
  func.func @transform_3(%arg0: i32) -> (i32, i32) {
    %c0_i32 = arith.constant 0 : i32
    %c0_i32_0 = arith.constant 0 : i32
    %c0_i32_1 = arith.constant 0 : i32
    return %c0_i32, %c0_i32_0 : i32, i32
  }
  func.func @transform_4(%arg0: i32) -> (i32, i32, i32) {
    %c0_i32 = arith.constant 0 : i32
    %c0_i32_0 = arith.constant 0 : i32
    %c0_i32_1 = arith.constant 0 : i32
    return %arg0, %c0_i32, %c0_i32_0 : i32, i32, i32
  }
}

</mosaic_0001>

<llo_original>
// kernel: tpu_custom_call.1
$region0: #{tpu_custom_call.1}
  #allocation0 [shape = 'u32[]', space=smem, size = 0x4, offset = 0x4, fixed_abs, tag = 'smem constant byte address 0x4 - core index']
  #allocation1 [shape = 'u32[144,128]{1,0:T(1,128)}', space=vmem, size = 0x12000, scoped, tag = 'internal scratch']
  %s0 = inlined_call_operand.hbm [shape: f32[2,16,128], index: 0, kind: input, shape index: {}]
  %s1 = inlined_call_operand.hbm [shape: f32[128,128], index: 1, kind: input, shape index: {}]
  %s2 = inlined_call_operand.hbm [shape: f32[128,128], index: 2, kind: input, shape index: {}]
  %s3 = inlined_call_operand.hbm [shape: f32[128,128], index: 3, kind: input, shape index: {}]
  %s4 = inlined_call_operand.hbm [shape: f32[2,16,128], index: 4, kind: output, shape index: {}]
  %s5 = sld [smem:[#allocation0]]
  $region65: #{tpu_custom_call.1} parent=0
    _
  %s7 = ssub.s32 1, %s5
  %s8 = scalar_select 0, %s7, %s5
  $region1: #{tpu_custom_call.1} parent=0
    #allocation2 [shape = 'u8[16384]{0}', space=vmem, size = 0x4000, scoped, tag = 'input window, operand 0']
    #allocation3 [shape = 's32[2]{0}', space=sflag, size = 0x8, scoped, tag = 'scoped memory for tpu_custom_call.1']
    #allocation4 [shape = 's32[2]{0}', space=sflag, size = 0x8, scoped, tag = 'scoped memory for tpu_custom_call.1']
    #allocation5 [shape = 'u8[65536]{0}', space=vmem, size = 0x10000, scoped, tag = 'input window, operand 1, single buffered']
    #allocation6 [shape = 's32[1]{0}', space=sflag, size = 0x4, scoped, tag = 'scoped memory for tpu_custom_call.1']
    #allocation7 [shape = 'u8[65536]{0}', space=vmem, size = 0x10000, scoped, tag = 'input window, operand 2, single buffered']
    #allocation8 [shape = 'u8[65536]{0}', space=vmem, size = 0x10000, scoped, tag = 'input window, operand 3, single buffered']
    #allocation9 [shape = 's32[1]{0}', space=sflag, size = 0x4, scoped, tag = 'scoped memory for tpu_custom_call.1']
    #allocation10 [shape = 'u8[16384]{0}', space=vmem, size = 0x4000, scoped, tag = 'output window, operand 0']
    %9 = vsyncpa [#allocation3], 0
    %s10 = scalar_lea.sflag [#allocation3], 1
    %11 = vsyncpa %s10, 0
    %12 = vsyncpa [#allocation6], 0
    %13 = vsyncpa [#allocation9], 0
    %14 = vsyncpa [#allocation4], 0
    %s15 = scalar_lea.sflag [#allocation4], 1
    %16 = vsyncpa %s15, 0
    loop: start=0, step=1, limit=4
    $region2: #{tpu_custom_call.1} parent=1 // loop_pre_header
      _
    $region3: #{tpu_custom_call.1} parent=1 // loop_header
      %s18 = sphi 0, %s22
      %p19 = scmp.ge.s32.totalorder %s18, 4
      %s28 = sphi 0, %s30
      %s31 = sphi 0, %s28
      %s32 = sphi 0, %s31
      %s48 = sphi 0, %s32
      %s52 = sphi 0, %s52
      %s54 = sphi 0, %s52
      %s55 = sphi 0, %s54
      %s69 = sphi 0, %s55
      %s73 = sphi 0, %s73
      %s75 = sphi 0, %s73
      %s76 = sphi 0, %s75
      %s90 = sphi 0, %s76
      %s94 = sphi 0, %s94
      %s96 = sphi 0, %s94
      %s97 = sphi 0, %s96
      %s111 = sphi 0, %s97
      %s117 = sphi 0, %s119
      %s120 = sphi 0, %s117
      %s121 = sphi 0, %s120
      %s137 = sphi 0, %s121
    $region4: #{tpu_custom_call.1} parent=1 // loop_header_branch
      %21 = sbr.rel (%p19) target = $region8
    $region5: #{tpu_custom_call.1} parent=1 // loop_body
      %s23 = ssub.s32 %s18, 1
      %s24 = ssub.s32 %s18, 2
      %s25 = sadd.s32 %s18, 1
      %s26 = ssub.s32 %s18, %s25
      %p27 = scmp.eq.s32.totalorder %s26, 0
      %s29 = sadd.s32 %s28, 1
      %s30 = scalar_select %p27, %s28, %s29
      %p33 = pneg %p27
      %p34 = scmp.eq.s32.totalorder %s18, 1
      %p35 = por %p33, %p34
      %p36 = scmp.ne.s32.totalorder %s28, %s31
      %p37 = scmp.eq.s32.totalorder %s18, 0
      %p38 = por %p36, %p37
      %p39 = scmp.ne.s32.totalorder %s28, %s31
      %p40 = scmp.eq.s32.totalorder %s23, 1
      %p41 = por %p39, %p40
      %p42 = scmp.ne.s32.totalorder %s31, %s32
      %p43 = scmp.eq.s32.totalorder %s23, 0
      %p44 = por %p42, %p43
      %p45 = scmp.ne.s32.totalorder %s31, %s32
      %p46 = scmp.eq.s32.totalorder %s24, 1
      %p47 = por %p45, %p46
      %p49 = scmp.ne.s32.totalorder %s32, %s48
      %p50 = scmp.eq.s32.totalorder %s24, 0
      %p51 = por %p49, %p50
      %s53 = sadd.s32 %s52, 1
      %p56 = scmp.eq.s32.totalorder %s18, 1
      %p57 = scmp.ne.s32.totalorder %s52, %s54
      %p58 = scmp.eq.s32.totalorder %s18, 0
      %p59 = por %p57, %p58
      %p60 = scmp.ne.s32.totalorder %s52, %s54
      %p61 = scmp.eq.s32.totalorder %s23, 1
      %p62 = por %p60, %p61
      %p63 = scmp.ne.s32.totalorder %s54, %s55
      %p64 = scmp.eq.s32.totalorder %s23, 0
      %p65 = por %p63, %p64
      %p66 = scmp.ne.s32.totalorder %s54, %s55
      %p67 = scmp.eq.s32.totalorder %s24, 1
      %p68 = por %p66, %p67
      %p70 = scmp.ne.s32.totalorder %s55, %s69
      %p71 = scmp.eq.s32.totalorder %s24, 0
      %p72 = por %p70, %p71
      %s74 = sadd.s32 %s73, 1
      %p77 = scmp.eq.s32.totalorder %s18, 1
      %p78 = scmp.ne.s32.totalorder %s73, %s75
      %p79 = scmp.eq.s32.totalorder %s18, 0
      %p80 = por %p78, %p79
      %p81 = scmp.ne.s32.totalorder %s73, %s75
      %p82 = scmp.eq.s32.totalorder %s23, 1
      %p83 = por %p81, %p82
      %p84 = scmp.ne.s32.totalorder %s75, %s76
      %p85 = scmp.eq.s32.totalorder %s23, 0
      %p86 = por %p84, %p85
      %p87 = scmp.ne.s32.totalorder %s75, %s76
      %p88 = scmp.eq.s32.totalorder %s24, 1
      %p89 = por %p87, %p88
      %p91 = scmp.ne.s32.totalorder %s76, %s90
      %p92 = scmp.eq.s32.totalorder %s24, 0
      %p93 = por %p91, %p92
      %s95 = sadd.s32 %s94, 1
      %p98 = scmp.eq.s32.totalorder %s18, 1
      %p99 = scmp.ne.s32.totalorder %s94, %s96
      %p100 = scmp.eq.s32.totalorder %s18, 0
      %p101 = por %p99, %p100
      %p102 = scmp.ne.s32.totalorder %s94, %s96
      %p103 = scmp.eq.s32.totalorder %s23, 1
      %p104 = por %p102, %p103
      %p105 = scmp.ne.s32.totalorder %s96, %s97
      %p106 = scmp.eq.s32.totalorder %s23, 0
      %p107 = por %p105, %p106
      %p108 = scmp.ne.s32.totalorder %s96, %s97
      %p109 = scmp.eq.s32.totalorder %s24, 1
      %p110 = por %p108, %p109
      %p112 = scmp.ne.s32.totalorder %s97, %s111
      %p113 = scmp.eq.s32.totalorder %s24, 0
      %p114 = por %p112, %p113
      %s115 = ssub.s32 %s18, %s25
      %p116 = scmp.eq.s32.totalorder %s115, 0
      %s118 = sadd.s32 %s117, 1
      %s119 = scalar_select %p116, %s117, %s118
      %p122 = pneg %p116
      %p123 = scmp.eq.s32.totalorder %s18, 1
      %p124 = por %p122, %p123
      %p125 = scmp.ne.s32.totalorder %s117, %s120
      %p126 = scmp.eq.s32.totalorder %s18, 0
      %p127 = por %p125, %p126
      %p128 = scmp.ne.s32.totalorder %s117, %s120
      %p129 = scmp.eq.s32.totalorder %s23, 1
      %p130 = por %p128, %p129
      %p131 = scmp.ne.s32.totalorder %s120, %s121
      %p132 = scmp.eq.s32.totalorder %s23, 0
      %p133 = por %p131, %p132
      %p134 = scmp.ne.s32.totalorder %s120, %s121
      %p135 = scmp.eq.s32.totalorder %s24, 1
      %p136 = por %p134, %p135
      %p138 = scmp.ne.s32.totalorder %s121, %s137
      %p139 = scmp.eq.s32.totalorder %s24, 0
      %p140 = por %p138, %p139
      %p141 = scmp.le.s32.totalorder 1, %s18
      %p142 = scmp.lt.s32.totalorder %s18, 3
      %p143 = pnand %p141, %p142
      %p144 = pneg %p143
      // Predicated region
      $region9: #{tpu_custom_call.1} parent=5 // pred_check
        _
      $region10: #{tpu_custom_call.1} parent=5 // pred_check_branch
        %146 = sbr.rel (%p143) target = $region12
      $region11: #{tpu_custom_call.1} parent=5 // pred_region
        %s147 = ssub.s32 %s18, 1
        // Predicated region
        $region13: #{tpu_custom_call.1} parent=11 // pred_check
          %p148 = pneg %p65
        $region14: #{tpu_custom_call.1} parent=11 // pred_check_branch
          %150 = sbr.rel (%p148) target = $region16
        $region15: #{tpu_custom_call.1} parent=11 // pred_region
          %s152 = ssub.s32 2048, 2048
          %153 = vsyncadd [#allocation6], %s152
          %s154 = sshll.u32 [#allocation5], 4
          %s155 = int_to_ptr.vmem [resolvable:$true] %s154
          %160 = dma.hbm_to_vmem [thread:$0]  %s1, 2048, %s155, [#allocation6], 128, 128, 8
        $region16: #{tpu_custom_call.1} parent=11 // pred_fallthru
          _
        // Predicated region
        $region17: #{tpu_custom_call.1} parent=11 // pred_check
          %p161 = pneg %p86
        $region18: #{tpu_custom_call.1} parent=11 // pred_check_branch
          %163 = sbr.rel (%p161) target = $region20
        $region19: #{tpu_custom_call.1} parent=11 // pred_region
          %s165 = ssub.s32 2048, 2048
          %166 = vsyncadd [#allocation6], %s165
          %s167 = sshll.u32 [#allocation7], 4
          %s168 = int_to_ptr.vmem [resolvable:$true] %s167
          %173 = dma.hbm_to_vmem [thread:$0]  %s2, 2048, %s168, [#allocation6], 128, 128, 8
        $region20: #{tpu_custom_call.1} parent=11 // pred_fallthru
          _
        // Predicated region
        $region21: #{tpu_custom_call.1} parent=11 // pred_check
          %p174 = pneg %p107
        $region22: #{tpu_custom_call.1} parent=11 // pred_check_branch
          %176 = sbr.rel (%p174) target = $region24
        $region23: #{tpu_custom_call.1} parent=11 // pred_region
          %s178 = ssub.s32 2048, 2048
          %179 = vsyncadd [#allocation9], %s178
          %s180 = sshll.u32 [#allocation8], 4
          %s181 = int_to_ptr.vmem [resolvable:$true] %s180
          %186 = dma.hbm_to_vmem [thread:$0]  %s3, 2048, %s181, [#allocation9], 128, 128, 8
        $region24: #{tpu_custom_call.1} parent=11 // pred_fallthru
          _
      $region12: #{tpu_custom_call.1} parent=5 // pred_fallthru
        _
      %p187 = scmp.lt.s32.totalorder %s18, 2
      // Predicated region
      $region25: #{tpu_custom_call.1} parent=5 // pred_check
        %p188 = pneg %p187
      $region26: #{tpu_custom_call.1} parent=5 // pred_check_branch
        %190 = sbr.rel (%p188) target = $region28
      $region27: #{tpu_custom_call.1} parent=5 // pred_region
        // Predicated region
        $region29: #{tpu_custom_call.1} parent=27 // pred_check
          %p191 = pneg %p38
        $region30: #{tpu_custom_call.1} parent=27 // pred_check_branch
          %193 = sbr.rel (%p191) target = $region32
        $region31: #{tpu_custom_call.1} parent=27 // pred_region
          %s194 = sand.u32 %s28, 1
          %s195 = scalar_lea.sflag [#allocation3], %s194
          %s196 = sand.u32 %s28, 1
          %s197 = smul.addr %s196, 16
          %s198 = scalar_lea.vmem [#allocation2], %s197
          %s200 = ssub.s32 256, 256
          %201 = vsyncadd %s195, %s200
          %s202 = smul.addr %s18, 2
          %s203 = smul.addr %s202, 128
          %s204 = scalar_lea.hbm %s0, %s203
          %s205 = sshll.u32 %s198, 4
          %s206 = int_to_ptr.vmem [resolvable:$true] %s205
          %211 = dma.hbm_to_vmem [thread:$0]  %s204, 256, %s206, %s195, 128, 128, 8
        $region32: #{tpu_custom_call.1} parent=27 // pred_fallthru
          _
      $region28: #{tpu_custom_call.1} parent=5 // pred_fallthru
        _
      %p212 = scmp.le.s32.totalorder 1, %s18
      %p213 = scmp.lt.s32.totalorder %s18, 3
      %p214 = pnand %p212, %p213
      %p215 = pneg %p214
      // Predicated region
      $region33: #{tpu_custom_call.1} parent=5 // pred_check
        _
      $region34: #{tpu_custom_call.1} parent=5 // pred_check_branch
        %217 = sbr.rel (%p214) target = $region36
      $region35: #{tpu_custom_call.1} parent=5 // pred_region
        %s218 = ssub.s32 %s18, 1
        %s219 = sand.u32 %s31, 1
        %s220 = scalar_lea.sflag [#allocation3], %s219
        %s221 = sand.u32 %s31, 1
        %s222 = smul.addr %s221, 16
        %s223 = scalar_lea.vmem [#allocation2], %s222
        // Predicated region
        $region37: #{tpu_custom_call.1} parent=35 // pred_check
          %p224 = pneg %p44
        $region38: #{tpu_custom_call.1} parent=35 // pred_check_branch
          %226 = sbr.rel (%p224) target = $region40
        $region39: #{tpu_custom_call.1} parent=35 // pred_region
          %227 = dma.done %s220, 256
        $region40: #{tpu_custom_call.1} parent=35 // pred_fallthru
          _
        // Predicated region
        $region41: #{tpu_custom_call.1} parent=35 // pred_check
          %p228 = pneg %p65
        $region42: #{tpu_custom_call.1} parent=35 // pred_check_branch
          %230 = sbr.rel (%p228) target = $region44
        $region43: #{tpu_custom_call.1} parent=35 // pred_region
          %231 = dma.done [#allocation6], 2048
        $region44: #{tpu_custom_call.1} parent=35 // pred_fallthru
          _
        // Predicated region
        $region45: #{tpu_custom_call.1} parent=35 // pred_check
          %p232 = pneg %p86
        $region46: #{tpu_custom_call.1} parent=35 // pred_check_branch
          %234 = sbr.rel (%p232) target = $region48
        $region47: #{tpu_custom_call.1} parent=35 // pred_region
          %235 = dma.done [#allocation6], 2048
        $region48: #{tpu_custom_call.1} parent=35 // pred_fallthru
          _
        // Predicated region
        $region49: #{tpu_custom_call.1} parent=35 // pred_check
          %p236 = pneg %p107
        $region50: #{tpu_custom_call.1} parent=35 // pred_check_branch
          %238 = sbr.rel (%p236) target = $region52
        $region51: #{tpu_custom_call.1} parent=35 // pred_region
          %239 = dma.done [#allocation9], 2048
        $region52: #{tpu_custom_call.1} parent=35 // pred_fallthru
          _
        %s240 = sand.u32 %s31, 1
        %s241 = scalar_lea.sflag [#allocation3], %s240
        %s242 = sand.u32 %s31, 1
        %s243 = smul.addr %s242, 16
        %s244 = scalar_lea.vmem [#allocation2], %s243
        %p245 = pneg %p44
        %p246 = pneg %p41
        %p247 = pneg %p65
        %p248 = pneg %p62
        %p249 = pneg %p86
        %p250 = pneg %p83
        %p251 = pneg %p107
        %p252 = pneg %p104
        %p253 = pneg %p133
        %p254 = pneg %p130
        %s255 = sand.u32 %s120, 1
        %s256 = scalar_lea.sflag [#allocation4], %s255
        %s257 = sand.u32 %s120, 1
        %s258 = smul.addr %s257, 16
        %s259 = scalar_lea.vmem [#allocation10], %s258
        %v261 = vld [vmem:[#allocation5] sm:$0xff]
        %v262 = vld [vmem:[#allocation5 + $0x8] sm:$0xff]
        %v263 = vld [vmem:[#allocation5 + $0x10] sm:$0xff]
        %v264 = vld [vmem:[#allocation5 + $0x18] sm:$0xff]
        %v265 = vld [vmem:[#allocation5 + $0x20] sm:$0xff]
        %v266 = vld [vmem:[#allocation5 + $0x28] sm:$0xff]
        %v267 = vld [vmem:[#allocation5 + $0x30] sm:$0xff]
        %v268 = vld [vmem:[#allocation5 + $0x38] sm:$0xff]
        %v269 = vld [vmem:[#allocation5 + $0x40] sm:$0xff]
        %v270 = vld [vmem:[#allocation5 + $0x48] sm:$0xff]
        %v271 = vld [vmem:[#allocation5 + $0x50] sm:$0xff]
        %v272 = vld [vmem:[#allocation5 + $0x58] sm:$0xff]
        %v273 = vld [vmem:[#allocation5 + $0x60] sm:$0xff]
        %v274 = vld [vmem:[#allocation5 + $0x68] sm:$0xff]
        %v275 = vld [vmem:[#allocation5 + $0x70] sm:$0xff]
        %v276 = vld [vmem:[#allocation5 + $0x78] sm:$0xff]
        %v277 = vpack.c.bf16 %v262, %v261
        %v278 = vpack.c.bf16 %v264, %v263
        %v279 = vpack.c.bf16 %v266, %v265
        %v280 = vpack.c.bf16 %v268, %v267
        %v281 = vpack.c.bf16 %v270, %v269
        %v282 = vpack.c.bf16 %v272, %v271
        %v283 = vpack.c.bf16 %v274, %v273
        %v284 = vpack.c.bf16 %v276, %v275
        %v285 = vld [vmem:[#allocation7] sm:$0xff]
        %v286 = vld [vmem:[#allocation7 + $0x8] sm:$0xff]
        %v287 = vld [vmem:[#allocation7 + $0x10] sm:$0xff]
        %v288 = vld [vmem:[#allocation7 + $0x18] sm:$0xff]
        %v289 = vld [vmem:[#allocation7 + $0x20] sm:$0xff]
        %v290 = vld [vmem:[#allocation7 + $0x28] sm:$0xff]
        %v291 = vld [vmem:[#allocation7 + $0x30] sm:$0xff]
        %v292 = vld [vmem:[#allocation7 + $0x38] sm:$0xff]
        %v293 = vld [vmem:[#allocation7 + $0x40] sm:$0xff]
        %v294 = vld [vmem:[#allocation7 + $0x48] sm:$0xff]
        %v295 = vld [vmem:[#allocation7 + $0x50] sm:$0xff]
        %v296 = vld [vmem:[#allocation7 + $0x58] sm:$0xff]
        %v297 = vld [vmem:[#allocation7 + $0x60] sm:$0xff]
        %v298 = vld [vmem:[#allocation7 + $0x68] sm:$0xff]
        %v299 = vld [vmem:[#allocation7 + $0x70] sm:$0xff]
        %v300 = vld [vmem:[#allocation7 + $0x78] sm:$0xff]
        %v301 = vpack.c.bf16 %v286, %v285
        %v302 = vpack.c.bf16 %v288, %v287
        %v303 = vpack.c.bf16 %v290, %v289
        %v304 = vpack.c.bf16 %v292, %v291
        %v305 = vpack.c.bf16 %v294, %v293
        %v306 = vpack.c.bf16 %v296, %v295
        %v307 = vpack.c.bf16 %v298, %v297
        %v308 = vpack.c.bf16 %v300, %v299
        %v309 = vld [vmem:[#allocation8] sm:$0xff]
        %v310 = vld [vmem:[#allocation8 + $0x8] sm:$0xff]
        %v311 = vld [vmem:[#allocation8 + $0x10] sm:$0xff]
        %v312 = vld [vmem:[#allocation8 + $0x18] sm:$0xff]
        %v313 = vld [vmem:[#allocation8 + $0x20] sm:$0xff]
        %v314 = vld [vmem:[#allocation8 + $0x28] sm:$0xff]
        %v315 = vld [vmem:[#allocation8 + $0x30] sm:$0xff]
        %v316 = vld [vmem:[#allocation8 + $0x38] sm:$0xff]
        %v317 = vld [vmem:[#allocation8 + $0x40] sm:$0xff]
        %v318 = vld [vmem:[#allocation8 + $0x48] sm:$0xff]
        %v319 = vld [vmem:[#allocation8 + $0x50] sm:$0xff]
        %v320 = vld [vmem:[#allocation8 + $0x58] sm:$0xff]
        %v321 = vld [vmem:[#allocation8 + $0x60] sm:$0xff]
        %v322 = vld [vmem:[#allocation8 + $0x68] sm:$0xff]
        %v323 = vld [vmem:[#allocation8 + $0x70] sm:$0xff]
        %v324 = vld [vmem:[#allocation8 + $0x78] sm:$0xff]
        %v325 = vpack.c.bf16 %v310, %v309
        %v326 = vpack.c.bf16 %v312, %v311
        %v327 = vpack.c.bf16 %v314, %v313
        %v328 = vpack.c.bf16 %v316, %v315
        %v329 = vpack.c.bf16 %v318, %v317
        %v330 = vpack.c.bf16 %v320, %v319
        %v331 = vpack.c.bf16 %v322, %v321
        %v332 = vpack.c.bf16 %v324, %v323
        %v333 = vlaneseq
        %v334 = vshrl.u32 %v333, 7
        %v335 = vadd.s32 %v334, 8
        %v336 = vlaneseq
        %v337 = vand.u32 %v336, 127
        %vm338 = vcmp.ge.s32.totalorder %v334, %v337
        %vm339 = vcmp.ge.s32.totalorder %v335, %v337
        %v340 = vld [vmem:[%s223] sm:$0xff]
        %v341 = vld [vmem:[%s223 + $0x8] sm:$0xff]
        %v342 = vpack.c.bf16 %v341, %v340
        %343 = vmatprep.subr.bf16.mxu0 0
        %344 = vmatpush1.bf16.msra.mxu0 %v284
        %345 = vmatprep.subr.bf16.mxu0 0
        %346 = vmatpush1.bf16.msra.mxu0 %v283
        %347 = vmatprep.subr.bf16.mxu0 0
        %348 = vmatpush1.bf16.msra.mxu0 %v282
        %349 = vmatprep.subr.bf16.mxu0 0
        %350 = vmatpush1.bf16.msra.mxu0 %v281
        %351 = vmatprep.subr.bf16.mxu0 0
        %352 = vmatpush1.bf16.msra.mxu0 %v280
        %353 = vmatprep.subr.bf16.mxu0 0
        %354 = vmatpush1.bf16.msra.mxu0 %v279
        %355 = vmatprep.subr.bf16.mxu0 0
        %356 = vmatpush1.bf16.msra.mxu0 %v278
        %357 = vmatprep.subr.bf16.mxu0 0
        %358 = vmatpush1.bf16.msra.mxu0 %v277
        %359 = vmatprep.subr.bf16.mxu0 0
        %360 = vmatpush2.bf16.msra.mxu0 0
        %361 = vmatprep.subr.bf16.mxu0 0
        %362 = vmatpush2.bf16.msra.mxu0 0
        %363 = vmatprep.subr.bf16.mxu0 0
        %364 = vmatpush2.bf16.msra.mxu0 0
        %365 = vmatprep.subr.bf16.mxu0 0
        %366 = vmatpush2.bf16.msra.mxu0 0
        %367 = vmatprep.subr.bf16.mxu0 0
        %368 = vmatpush2.bf16.msra.mxu0 0
        %369 = vmatprep.subr.bf16.mxu0 0
        %370 = vmatpush2.bf16.msra.mxu0 0
        %371 = vmatprep.subr.bf16.mxu0 0
        %372 = vmatpush2.bf16.msra.mxu0 0
        %373 = vmatprep.subr.bf16.mxu0 0
        %374 = vmatpush2.bf16.msra.mxu0 0
        %375 = vmatprep.mubr.bf16.mxu0 0
        %376 = vmatmul.mubr.bf16.gmra.mxu0 %v342
        %v377 = vpop.f32.mrf.mxu0
        %v378 = vadd.f32 0.0, %v377
        %v379 = vpop.f32.mrf.mxu0
        %v380 = vpop.f32.mrf.mxu0
        %v381 = vadd.f32 0.0, %v380
        %v382 = vpop.f32.mrf.mxu0
        %383 = vdwg.mxu0
        %384 = vmatprep.subr.bf16.mxu0 0
        %385 = vmatpush1.bf16.msra.mxu0 %v308
        %386 = vmatprep.subr.bf16.mxu0 0
        %387 = vmatpush1.bf16.msra.mxu0 %v307
        %388 = vmatprep.subr.bf16.mxu0 0
        %389 = vmatpush1.bf16.msra.mxu0 %v306
        %390 = vmatprep.subr.bf16.mxu0 0
        %391 = vmatpush1.bf16.msra.mxu0 %v305
        %392 = vmatprep.subr.bf16.mxu0 0
        %393 = vmatpush1.bf16.msra.mxu0 %v304
        %394 = vmatprep.subr.bf16.mxu0 0
        %395 = vmatpush1.bf16.msra.mxu0 %v303
        %396 = vmatprep.subr.bf16.mxu0 0
        %397 = vmatpush1.bf16.msra.mxu0 %v302
        %398 = vmatprep.subr.bf16.mxu0 0
        %399 = vmatpush1.bf16.msra.mxu0 %v301
        %400 = vmatprep.subr.bf16.mxu0 0
        %401 = vmatpush2.bf16.msra.mxu0 0
        %402 = vmatprep.subr.bf16.mxu0 0
        %403 = vmatpush2.bf16.msra.mxu0 0
        %404 = vmatprep.subr.bf16.mxu0 0
        %405 = vmatpush2.bf16.msra.mxu0 0
        %406 = vmatprep.subr.bf16.mxu0 0
        %407 = vmatpush2.bf16.msra.mxu0 0
        %408 = vmatprep.subr.bf16.mxu0 0
        %409 = vmatpush2.bf16.msra.mxu0 0
        %410 = vmatprep.subr.bf16.mxu0 0
        %411 = vmatpush2.bf16.msra.mxu0 0
        %412 = vmatprep.subr.bf16.mxu0 0
        %413 = vmatpush2.bf16.msra.mxu0 0
        %414 = vmatprep.subr.bf16.mxu0 0
        %415 = vmatpush2.bf16.msra.mxu0 0
        %416 = vmatprep.mubr.bf16.mxu0 0
        %417 = vmatmul.mubr.bf16.gmra.mxu0 %v342
        %v418 = vpop.f32.mrf.mxu0
        %v419 = vadd.f32 0.0, %v418
        %v420 = vpop.f32.mrf.mxu0
        %v421 = vpop.f32.mrf.mxu0
        %v422 = vadd.f32 0.0, %v421
        %v423 = vpop.f32.mrf.mxu0
        %424 = vdwg.mxu0
        %v425 = vmul.f32 %v419, 0.088388346
        %v426 = vmul.f32 %v422, 0.088388346
        %427 = vmatprep.subr.bf16.mxu0 0
        %428 = vmatpush1.bf16.msra.mxu0 %v332
        %429 = vmatprep.subr.bf16.mxu0 0
        %430 = vmatpush1.bf16.msra.mxu0 %v331
        %431 = vmatprep.subr.bf16.mxu0 0
        %432 = vmatpush1.bf16.msra.mxu0 %v330
        %433 = vmatprep.subr.bf16.mxu0 0
        %434 = vmatpush1.bf16.msra.mxu0 %v329
        %435 = vmatprep.subr.bf16.mxu0 0
        %436 = vmatpush1.bf16.msra.mxu0 %v328
        %437 = vmatprep.subr.bf16.mxu0 0
        %438 = vmatpush1.bf16.msra.mxu0 %v327
        %439 = vmatprep.subr.bf16.mxu0 0
        %440 = vmatpush1.bf16.msra.mxu0 %v326
        %441 = vmatprep.subr.bf16.mxu0 0
        %442 = vmatpush1.bf16.msra.mxu0 %v325
        %443 = vmatprep.subr.bf16.mxu0 0
        %444 = vmatpush2.bf16.msra.mxu0 0
        %445 = vmatprep.subr.bf16.mxu0 0
        %446 = vmatpush2.bf16.msra.mxu0 0
        %447 = vmatprep.subr.bf16.mxu0 0
        %448 = vmatpush2.bf16.msra.mxu0 0
        %449 = vmatprep.subr.bf16.mxu0 0
        %450 = vmatpush2.bf16.msra.mxu0 0
        %451 = vmatprep.subr.bf16.mxu0 0
        %452 = vmatpush2.bf16.msra.mxu0 0
        %453 = vmatprep.subr.bf16.mxu0 0
        %454 = vmatpush2.bf16.msra.mxu0 0
        %455 = vmatprep.subr.bf16.mxu0 0
        %456 = vmatpush2.bf16.msra.mxu0 0
        %457 = vmatprep.subr.bf16.mxu0 0
        %458 = vmatpush2.bf16.msra.mxu0 0
        %459 = vmatprep.mubr.bf16.mxu0 0
        %460 = vmatmul.mubr.bf16.gmra.mxu0 %v342
        %v461 = vpop.f32.mrf.mxu0
        %v462 = vadd.f32 0.0, %v461
        %v463 = vpop.f32.mrf.mxu0
        %v464 = vpop.f32.mrf.mxu0
        %v465 = vadd.f32 0.0, %v464
        %v466 = vpop.f32.mrf.mxu0
        %467 = vdwg.mxu0
        %v468 = vpack.c.bf16 %v426, %v425
        %v469 = vpack.c.bf16 %v381, %v378
        %v470 = vpack.c.bf16 %v465, %v462
        %vm471 = vcmask 261120
        %v473 = vsel %vm471, %v468, 0
        %v476 = vsel %vm471, %v469, 0
        %478 = vmatprep.subr.bf16.mxu0 0
        %479 = vmatpush1.bf16.xpose.msra.mxu0 0
        %480 = vmatprep.subr.bf16.mxu0 0
        %481 = vmatpush1.bf16.xpose.msra.mxu0 0
        %482 = vmatprep.subr.bf16.mxu0 0
        %483 = vmatpush1.bf16.xpose.msra.mxu0 0
        %484 = vmatprep.subr.bf16.mxu0 0
        %485 = vmatpush1.bf16.xpose.msra.mxu0 0
        %486 = vmatprep.subr.bf16.mxu0 0
        %487 = vmatpush1.bf16.xpose.msra.mxu0 0
        %488 = vmatprep.subr.bf16.mxu0 0
        %489 = vmatpush1.bf16.xpose.msra.mxu0 0
        %490 = vmatprep.subr.bf16.mxu0 0
        %491 = vmatpush1.bf16.xpose.msra.mxu0 0
        %492 = vmatprep.subr.bf16.mxu0 0
        %493 = vmatpush1.bf16.xpose.msra.mxu0 %v476
        %494 = vmatprep.subr.bf16.mxu0 0
        %495 = vmatpush2.bf16.xpose.msra.mxu0 0
        %496 = vmatprep.subr.bf16.mxu0 0
        %497 = vmatpush2.bf16.xpose.msra.mxu0 0
        %498 = vmatprep.subr.bf16.mxu0 0
        %499 = vmatpush2.bf16.xpose.msra.mxu0 0
        %500 = vmatprep.subr.bf16.mxu0 0
        %501 = vmatpush2.bf16.xpose.msra.mxu0 0
        %502 = vmatprep.subr.bf16.mxu0 0
        %503 = vmatpush2.bf16.xpose.msra.mxu0 0
        %504 = vmatprep.subr.bf16.mxu0 0
        %505 = vmatpush2.bf16.xpose.msra.mxu0 0
        %506 = vmatprep.subr.bf16.mxu0 0
        %507 = vmatpush2.bf16.xpose.msra.mxu0 0
        %508 = vmatprep.subr.bf16.mxu0 0
        %509 = vmatpush2.bf16.xpose.msra.mxu0 0
        %510 = vmatprep.mubr.bf16.mxu0 0
        %511 = vmatmul.mubr.bf16.gmra.mxu0 %v473
        %v512 = vpop.f32.mrf.mxu0
        %v513 = vadd.f32 0.0, %v512
        %v514 = vpop.f32.mrf.mxu0
        %v515 = vpop.f32.mrf.mxu0
        %v516 = vadd.f32 0.0, %v515
        %v517 = vpop.f32.mrf.mxu0
        %518 = vdwg.mxu0
        %v519 = vsel %vm338, %v513, -1e+30
        %v520 = vsel %vm339, %v516, -1e+30
        %vm521 = vcmask 130048
        %v522 = vsel %vm521, %v519, -inf
        %523 = vmax.xlane.f32.xlu0 %v522
        %v524 = vpop.xlane.xlu0 %523
        %v525 = vsel %vm521, %v520, -inf
        %526 = vmax.xlane.f32.xlu0 %v525
        %v527 = vpop.xlane.xlu0 %526
        %v528 = vsub.f32 %v519, %v524
        %v529 = vsub.f32 %v520, %v527
        %v530 = vmul.f32 %v528, 1.442695
        %v531 = vpow.pop %v530
        %v532 = vmul.f32 %v529, 1.442695
        %v533 = vpow.pop %v532
        %v534 = vsel %vm338, %v531, 0.0
        %v535 = vsel %vm339, %v533, 0.0
        %v536 = vsel %vm521, %v534, 0.0
        %537 = vadd.xlane.f32.xlu0 %v536
        %v538 = vpop.xlane.xlu0 %537
        %v539 = vsel %vm521, %v535, 0.0
        %540 = vadd.xlane.f32.xlu0 %v539
        %v541 = vpop.xlane.xlu0 %540
        %v542 = vrcp.pop %v538
        %v543 = vrcp.pop %v541
        %v544 = vmul.f32 %v534, %v542
        %v545 = vmul.f32 %v535, %v543
        %v546 = vpack.c.bf16 %v545, %v544
        %v548 = vsel %vm521, %v546, 0
        %550 = vmatprep.subr.bf16.mxu0 0
        %551 = vmatpush1.bf16.msra.mxu0 0
        %552 = vmatprep.subr.bf16.mxu0 0
        %553 = vmatpush1.bf16.msra.mxu0 0
        %554 = vmatprep.subr.bf16.mxu0 0
        %555 = vmatpush1.bf16.msra.mxu0 0
        %556 = vmatprep.subr.bf16.mxu0 0
        %557 = vmatpush1.bf16.msra.mxu0 0
        %558 = vmatprep.subr.bf16.mxu0 0
        %559 = vmatpush1.bf16.msra.mxu0 0
        %560 = vmatprep.subr.bf16.mxu0 0
        %561 = vmatpush1.bf16.msra.mxu0 0
        %562 = vmatprep.subr.bf16.mxu0 0
        %563 = vmatpush1.bf16.msra.mxu0 0
        %564 = vmatprep.subr.bf16.mxu0 0
        %565 = vmatpush1.bf16.msra.mxu0 %v470
        %566 = vmatprep.subr.bf16.mxu0 0
        %567 = vmatpush2.bf16.msra.mxu0 0
        %568 = vmatprep.subr.bf16.mxu0 0
        %569 = vmatpush2.bf16.msra.mxu0 0
        %570 = vmatprep.subr.bf16.mxu0 0
        %571 = vmatpush2.bf16.msra.mxu0 0
        %572 = vmatprep.subr.bf16.mxu0 0
        %573 = vmatpush2.bf16.msra.mxu0 0
        %574 = vmatprep.subr.bf16.mxu0 0
        %575 = vmatpush2.bf16.msra.mxu0 0
        %576 = vmatprep.subr.bf16.mxu0 0
        %577 = vmatpush2.bf16.msra.mxu0 0
        %578 = vmatprep.subr.bf16.mxu0 0
        %579 = vmatpush2.bf16.msra.mxu0 0
        %580 = vmatprep.subr.bf16.mxu0 0
        %581 = vmatpush2.bf16.msra.mxu0 0
        %582 = vmatprep.mubr.bf16.mxu0 0
        %583 = vmatmul.mubr.bf16.gmra.mxu0 %v548
        %v584 = vpop.f32.mrf.mxu0
        %v585 = vadd.f32 0.0, %v584
        %v586 = vpop.f32.mrf.mxu0
        %v587 = vpop.f32.mrf.mxu0
        %v588 = vadd.f32 0.0, %v587
        %v589 = vpop.f32.mrf.mxu0
        %590 = vdwg.mxu0
        %592 = vrot.lane.b32.xlu0 %v468, 96
        %v593 = vpop.permute.xlu0 %592
        %595 = vrot.lane.b32.xlu0 %v469, 96
        %v596 = vpop.permute.xlu0 %595
        %v598 = vsel %vm471, %v593, 0
        %v601 = vsel %vm471, %v596, 0
        %603 = vmatprep.subr.bf16.mxu0 0
        %604 = vmatpush1.bf16.xpose.msra.mxu0 0
        %605 = vmatprep.subr.bf16.mxu0 0
        %606 = vmatpush1.bf16.xpose.msra.mxu0 0
        %607 = vmatprep.subr.bf16.mxu0 0
        %608 = vmatpush1.bf16.xpose.msra.mxu0 0
        %609 = vmatprep.subr.bf16.mxu0 0
        %610 = vmatpush1.bf16.xpose.msra.mxu0 0
        %611 = vmatprep.subr.bf16.mxu0 0
        %612 = vmatpush1.bf16.xpose.msra.mxu0 0
        %613 = vmatprep.subr.bf16.mxu0 0
        %614 = vmatpush1.bf16.xpose.msra.mxu0 0
        %615 = vmatprep.subr.bf16.mxu0 0
        %616 = vmatpush1.bf16.xpose.msra.mxu0 0
        %617 = vmatprep.subr.bf16.mxu0 0
        %618 = vmatpush1.bf16.xpose.msra.mxu0 %v601
        %619 = vmatprep.subr.bf16.mxu0 0
        %620 = vmatpush2.bf16.xpose.msra.mxu0 0
        %621 = vmatprep.subr.bf16.mxu0 0
        %622 = vmatpush2.bf16.xpose.msra.mxu0 0
        %623 = vmatprep.subr.bf16.mxu0 0
        %624 = vmatpush2.bf16.xpose.msra.mxu0 0
        %625 = vmatprep.subr.bf16.mxu0 0
        %626 = vmatpush2.bf16.xpose.msra.mxu0 0
        %627 = vmatprep.subr.bf16.mxu0 0
        %628 = vmatpush2.bf16.xpose.msra.mxu0 0
        %629 = vmatprep.subr.bf16.mxu0 0
        %630 = vmatpush2.bf16.xpose.msra.mxu0 0
        %631 = vmatprep.subr.bf16.mxu0 0
        %632 = vmatpush2.bf16.xpose.msra.mxu0 0
        %633 = vmatprep.subr.bf16.mxu0 0
        %634 = vmatpush2.bf16.xpose.msra.mxu0 0
        %635 = vmatprep.mubr.bf16.mxu0 0
        %636 = vmatmul.mubr.bf16.gmra.mxu0 %v598
        %v637 = vpop.f32.mrf.mxu0
        %v638 = vadd.f32 0.0, %v637
        %v639 = vpop.f32.mrf.mxu0
        %v640 = vpop.f32.mrf.mxu0
        %v641 = vadd.f32 0.0, %v640
        %v642 = vpop.f32.mrf.mxu0
        %643 = vdwg.mxu0
        %v644 = vsel %vm338, %v638, -1e+30
        %v645 = vsel %vm339, %v641, -1e+30
        %v646 = vsel %vm521, %v644, -inf
        %647 = vmax.xlane.f32.xlu0 %v646
        %v648 = vpop.xlane.xlu0 %647
        %v649 = vsel %vm521, %v645, -inf
        %650 = vmax.xlane.f32.xlu0 %v649
        %v651 = vpop.xlane.xlu0 %650
        %v652 = vsub.f32 %v644, %v648
        %v653 = vsub.f32 %v645, %v651
        %v654 = vmul.f32 %v652, 1.442695
        %v655 = vpow.pop %v654
        %v656 = vmul.f32 %v653, 1.442695
        %v657 = vpow.pop %v656
        %v658 = vsel %vm338, %v655, 0.0
        %v659 = vsel %vm339, %v657, 0.0
        %v660 = vsel %vm521, %v658, 0.0
        %661 = vadd.xlane.f32.xlu0 %v660
        %v662 = vpop.xlane.xlu0 %661
        %v663 = vsel %vm521, %v659, 0.0
        %664 = vadd.xlane.f32.xlu0 %v663
        %v665 = vpop.xlane.xlu0 %664
        %v666 = vrcp.pop %v662
        %v667 = vrcp.pop %v665
        %v668 = vmul.f32 %v658, %v666
        %v669 = vmul.f32 %v659, %v667
        %v670 = vpack.c.bf16 %v669, %v668
        %672 = vrot.lane.b32.xlu0 %v470, 96
        %v673 = vpop.permute.xlu0 %672
        %v676 = vsel %vm521, %v670, 0
        %678 = vmatprep.subr.bf16.mxu0 0
        %679 = vmatpush1.bf16.msra.mxu0 0
        %680 = vmatprep.subr.bf16.mxu0 0
        %681 = vmatpush1.bf16.msra.mxu0 0
        %682 = vmatprep.subr.bf16.mxu0 0
        %683 = vmatpush1.bf16.msra.mxu0 0
        %684 = vmatprep.subr.bf16.mxu0 0
        %685 = vmatpush1.bf16.msra.mxu0 0
        %686 = vmatprep.subr.bf16.mxu0 0
        %687 = vmatpush1.bf16.msra.mxu0 0
        %688 = vmatprep.subr.bf16.mxu0 0
        %689 = vmatpush1.bf16.msra.mxu0 0
        %690 = vmatprep.subr.bf16.mxu0 0
        %691 = vmatpush1.bf16.msra.mxu0 0
        %692 = vmatprep.subr.bf16.mxu0 0
        %693 = vmatpush1.bf16.msra.mxu0 %v673
        %694 = vmatprep.subr.bf16.mxu0 0
        %695 = vmatpush2.bf16.msra.mxu0 0
        %696 = vmatprep.subr.bf16.mxu0 0
        %697 = vmatpush2.bf16.msra.mxu0 0
        %698 = vmatprep.subr.bf16.mxu0 0
        %699 = vmatpush2.bf16.msra.mxu0 0
        %700 = vmatprep.subr.bf16.mxu0 0
        %701 = vmatpush2.bf16.msra.mxu0 0
        %702 = vmatprep.subr.bf16.mxu0 0
        %703 = vmatpush2.bf16.msra.mxu0 0
        %704 = vmatprep.subr.bf16.mxu0 0
        %705 = vmatpush2.bf16.msra.mxu0 0
        %706 = vmatprep.subr.bf16.mxu0 0
        %707 = vmatpush2.bf16.msra.mxu0 0
        %708 = vmatprep.subr.bf16.mxu0 0
        %709 = vmatpush2.bf16.msra.mxu0 0
        %710 = vmatprep.mubr.bf16.mxu0 0
        %711 = vmatmul.mubr.bf16.gmra.mxu0 %v676
        %v712 = vpop.f32.mrf.mxu0
        %v713 = vadd.f32 0.0, %v712
        %v714 = vpop.f32.mrf.mxu0
        %v715 = vpop.f32.mrf.mxu0
        %v716 = vadd.f32 0.0, %v715
        %v717 = vpop.f32.mrf.mxu0
        %718 = vdwg.mxu0
        %719 = vrot.lane.b32.xlu0 %v468, 64
        %v720 = vpop.permute.xlu0 %719
        %721 = vrot.lane.b32.xlu0 %v469, 64
        %v722 = vpop.permute.xlu0 %721
        %v724 = vsel %vm471, %v720, 0
        %v727 = vsel %vm471, %v722, 0
        %729 = vmatprep.subr.bf16.mxu0 0
        %730 = vmatpush1.bf16.xpose.msra.mxu0 0
        %731 = vmatprep.subr.bf16.mxu0 0
        %732 = vmatpush1.bf16.xpose.msra.mxu0 0
        %733 = vmatprep.subr.bf16.mxu0 0
        %734 = vmatpush1.bf16.xpose.msra.mxu0 0
        %735 = vmatprep.subr.bf16.mxu0 0
        %736 = vmatpush1.bf16.xpose.msra.mxu0 0
        %737 = vmatprep.subr.bf16.mxu0 0
        %738 = vmatpush1.bf16.xpose.msra.mxu0 0
        %739 = vmatprep.subr.bf16.mxu0 0
        %740 = vmatpush1.bf16.xpose.msra.mxu0 0
        %741 = vmatprep.subr.bf16.mxu0 0
        %742 = vmatpush1.bf16.xpose.msra.mxu0 0
        %743 = vmatprep.subr.bf16.mxu0 0
        %744 = vmatpush1.bf16.xpose.msra.mxu0 %v727
        %745 = vmatprep.subr.bf16.mxu0 0
        %746 = vmatpush2.bf16.xpose.msra.mxu0 0
        %747 = vmatprep.subr.bf16.mxu0 0
        %748 = vmatpush2.bf16.xpose.msra.mxu0 0
        %749 = vmatprep.subr.bf16.mxu0 0
        %750 = vmatpush2.bf16.xpose.msra.mxu0 0
        %751 = vmatprep.subr.bf16.mxu0 0
        %752 = vmatpush2.bf16.xpose.msra.mxu0 0
        %753 = vmatprep.subr.bf16.mxu0 0
        %754 = vmatpush2.bf16.xpose.msra.mxu0 0
        %755 = vmatprep.subr.bf16.mxu0 0
        %756 = vmatpush2.bf16.xpose.msra.mxu0 0
        %757 = vmatprep.subr.bf16.mxu0 0
        %758 = vmatpush2.bf16.xpose.msra.mxu0 0
        %759 = vmatprep.subr.bf16.mxu0 0
        %760 = vmatpush2.bf16.xpose.msra.mxu0 0
        %761 = vmatprep.mubr.bf16.mxu0 0
        %762 = vmatmul.mubr.bf16.gmra.mxu0 %v724
        %v763 = vpop.f32.mrf.mxu0
        %v764 = vadd.f32 0.0, %v763
        %v765 = vpop.f32.mrf.mxu0
        %v766 = vpop.f32.mrf.mxu0
        %v767 = vadd.f32 0.0, %v766
        %v768 = vpop.f32.mrf.mxu0
        %769 = vdwg.mxu0
        %v770 = vsel %vm338, %v764, -1e+30
        %v771 = vsel %vm339, %v767, -1e+30
        %v772 = vsel %vm521, %v770, -inf
        %773 = vmax.xlane.f32.xlu0 %v772
        %v774 = vpop.xlane.xlu0 %773
        %v775 = vsel %vm521, %v771, -inf
        %776 = vmax.xlane.f32.xlu0 %v775
        %v777 = vpop.xlane.xlu0 %776
        %v778 = vsub.f32 %v770, %v774
        %v779 = vsub.f32 %v771, %v777
        %v780 = vmul.f32 %v778, 1.442695
        %v781 = vpow.pop %v780
        %v782 = vmul.f32 %v779, 1.442695
        %v783 = vpow.pop %v782
        %v784 = vsel %vm338, %v781, 0.0
        %v785 = vsel %vm339, %v783, 0.0
        %v786 = vsel %vm521, %v784, 0.0
        %787 = vadd.xlane.f32.xlu0 %v786
        %v788 = vpop.xlane.xlu0 %787
        %v789 = vsel %vm521, %v785, 0.0
        %790 = vadd.xlane.f32.xlu0 %v789
        %v791 = vpop.xlane.xlu0 %790
        %v792 = vrcp.pop %v788
        %v793 = vrcp.pop %v791
        %v794 = vmul.f32 %v784, %v792
        %v795 = vmul.f32 %v785, %v793
        %v796 = vpack.c.bf16 %v795, %v794
        %797 = vrot.lane.b32.xlu0 %v470, 64
        %v798 = vpop.permute.xlu0 %797
        %v801 = vsel %vm521, %v796, 0
        %803 = vmatprep.subr.bf16.mxu0 0
        %804 = vmatpush1.bf16.msra.mxu0 0
        %805 = vmatprep.subr.bf16.mxu0 0
        %806 = vmatpush1.bf16.msra.mxu0 0
        %807 = vmatprep.subr.bf16.mxu0 0
        %808 = vmatpush1.bf16.msra.mxu0 0
        %809 = vmatprep.subr.bf16.mxu0 0
        %810 = vmatpush1.bf16.msra.mxu0 0
        %811 = vmatprep.subr.bf16.mxu0 0
        %812 = vmatpush1.bf16.msra.mxu0 0
        %813 = vmatprep.subr.bf16.mxu0 0
        %814 = vmatpush1.bf16.msra.mxu0 0
        %815 = vmatprep.subr.bf16.mxu0 0
        %816 = vmatpush1.bf16.msra.mxu0 0
        %817 = vmatprep.subr.bf16.mxu0 0
        %818 = vmatpush1.bf16.msra.mxu0 %v798
        %819 = vmatprep.subr.bf16.mxu0 0
        %820 = vmatpush2.bf16.msra.mxu0 0
        %821 = vmatprep.subr.bf16.mxu0 0
        %822 = vmatpush2.bf16.msra.mxu0 0
        %823 = vmatprep.subr.bf16.mxu0 0
        %824 = vmatpush2.bf16.msra.mxu0 0
        %825 = vmatprep.subr.bf16.mxu0 0
        %826 = vmatpush2.bf16.msra.mxu0 0
        %827 = vmatprep.subr.bf16.mxu0 0
        %828 = vmatpush2.bf16.msra.mxu0 0
        %829 = vmatprep.subr.bf16.mxu0 0
        %830 = vmatpush2.bf16.msra.mxu0 0
        %831 = vmatprep.subr.bf16.mxu0 0
        %832 = vmatpush2.bf16.msra.mxu0 0
        %833 = vmatprep.subr.bf16.mxu0 0
        %834 = vmatpush2.bf16.msra.mxu0 0
        %835 = vmatprep.mubr.bf16.mxu0 0
        %836 = vmatmul.mubr.bf16.gmra.mxu0 %v801
        %v837 = vpop.f32.mrf.mxu0
        %v838 = vadd.f32 0.0, %v837
        %v839 = vpop.f32.mrf.mxu0
        %v840 = vpop.f32.mrf.mxu0
        %v841 = vadd.f32 0.0, %v840
        %v842 = vpop.f32.mrf.mxu0
        %843 = vdwg.mxu0
        %844 = vrot.lane.b32.xlu0 %v468, 32
        %v845 = vpop.permute.xlu0 %844
        %846 = vrot.lane.b32.xlu0 %v469, 32
        %v847 = vpop.permute.xlu0 %846
        %v849 = vsel %vm471, %v845, 0
        %v852 = vsel %vm471, %v847, 0
        %854 = vmatprep.subr.bf16.mxu0 0
        %855 = vmatpush1.bf16.xpose.msra.mxu0 0
        %856 = vmatprep.subr.bf16.mxu0 0
        %857 = vmatpush1.bf16.xpose.msra.mxu0 0
        %858 = vmatprep.subr.bf16.mxu0 0
        %859 = vmatpush1.bf16.xpose.msra.mxu0 0
        %860 = vmatprep.subr.bf16.mxu0 0
        %861 = vmatpush1.bf16.xpose.msra.mxu0 0
        %862 = vmatprep.subr.bf16.mxu0 0
        %863 = vmatpush1.bf16.xpose.msra.mxu0 0
        %864 = vmatprep.subr.bf16.mxu0 0
        %865 = vmatpush1.bf16.xpose.msra.mxu0 0
        %866 = vmatprep.subr.bf16.mxu0 0
        %867 = vmatpush1.bf16.xpose.msra.mxu0 0
        %868 = vmatprep.subr.bf16.mxu0 0
        %869 = vmatpush1.bf16.xpose.msra.mxu0 %v852
        %870 = vmatprep.subr.bf16.mxu0 0
        %871 = vmatpush2.bf16.xpose.msra.mxu0 0
        %872 = vmatprep.subr.bf16.mxu0 0
        %873 = vmatpush2.bf16.xpose.msra.mxu0 0
        %874 = vmatprep.subr.bf16.mxu0 0
        %875 = vmatpush2.bf16.xpose.msra.mxu0 0
        %876 = vmatprep.subr.bf16.mxu0 0
        %877 = vmatpush2.bf16.xpose.msra.mxu0 0
        %878 = vmatprep.subr.bf16.mxu0 0
        %879 = vmatpush2.bf16.xpose.msra.mxu0 0
        %880 = vmatprep.subr.bf16.mxu0 0
        %881 = vmatpush2.bf16.xpose.msra.mxu0 0
        %882 = vmatprep.subr.bf16.mxu0 0
        %883 = vmatpush2.bf16.xpose.msra.mxu0 0
        %884 = vmatprep.subr.bf16.mxu0 0
        %885 = vmatpush2.bf16.xpose.msra.mxu0 0
        %886 = vmatprep.mubr.bf16.mxu0 0
        %887 = vmatmul.mubr.bf16.gmra.mxu0 %v849
        %v888 = vpop.f32.mrf.mxu0
        %v889 = vadd.f32 0.0, %v888
        %v890 = vpop.f32.mrf.mxu0
        %v891 = vpop.f32.mrf.mxu0
        %v892 = vadd.f32 0.0, %v891
        %v893 = vpop.f32.mrf.mxu0
        %894 = vdwg.mxu0
        %v895 = vsel %vm338, %v889, -1e+30
        %v896 = vsel %vm339, %v892, -1e+30
        %v897 = vsel %vm521, %v895, -inf
        %898 = vmax.xlane.f32.xlu0 %v897
        %v899 = vpop.xlane.xlu0 %898
        %v900 = vsel %vm521, %v896, -inf
        %901 = vmax.xlane.f32.xlu0 %v900
        %v902 = vpop.xlane.xlu0 %901
        %v903 = vsub.f32 %v895, %v899
        %v904 = vsub.f32 %v896, %v902
        %v905 = vmul.f32 %v903, 1.442695
        %v906 = vpow.pop %v905
        %v907 = vmul.f32 %v904, 1.442695
        %v908 = vpow.pop %v907
        %v909 = vsel %vm338, %v906, 0.0
        %v910 = vsel %vm339, %v908, 0.0
        %v911 = vsel %vm521, %v909, 0.0
        %912 = vadd.xlane.f32.xlu0 %v911
        %v913 = vpop.xlane.xlu0 %912
        %v914 = vsel %vm521, %v910, 0.0
        %915 = vadd.xlane.f32.xlu0 %v914
        %v916 = vpop.xlane.xlu0 %915
        %v917 = vrcp.pop %v913
        %v918 = vrcp.pop %v916
        %v919 = vmul.f32 %v909, %v917
        %v920 = vmul.f32 %v910, %v918
        %v921 = vpack.c.bf16 %v920, %v919
        %922 = vrot.lane.b32.xlu0 %v470, 32
        %v923 = vpop.permute.xlu0 %922
        %v926 = vsel %vm521, %v921, 0
        %928 = vmatprep.subr.bf16.mxu0 0
        %929 = vmatpush1.bf16.msra.mxu0 0
        %930 = vmatprep.subr.bf16.mxu0 0
        %931 = vmatpush1.bf16.msra.mxu0 0
        %932 = vmatprep.subr.bf16.mxu0 0
        %933 = vmatpush1.bf16.msra.mxu0 0
        %934 = vmatprep.subr.bf16.mxu0 0
        %935 = vmatpush1.bf16.msra.mxu0 0
        %936 = vmatprep.subr.bf16.mxu0 0
        %937 = vmatpush1.bf16.msra.mxu0 0
        %938 = vmatprep.subr.bf16.mxu0 0
        %939 = vmatpush1.bf16.msra.mxu0 0
        %940 = vmatprep.subr.bf16.mxu0 0
        %941 = vmatpush1.bf16.msra.mxu0 0
        %942 = vmatprep.subr.bf16.mxu0 0
        %943 = vmatpush1.bf16.msra.mxu0 %v923
        %944 = vmatprep.subr.bf16.mxu0 0
        %945 = vmatpush2.bf16.msra.mxu0 0
        %946 = vmatprep.subr.bf16.mxu0 0
        %947 = vmatpush2.bf16.msra.mxu0 0
        %948 = vmatprep.subr.bf16.mxu0 0
        %949 = vmatpush2.bf16.msra.mxu0 0
        %950 = vmatprep.subr.bf16.mxu0 0
        %951 = vmatpush2.bf16.msra.mxu0 0
        %952 = vmatprep.subr.bf16.mxu0 0
        %953 = vmatpush2.bf16.msra.mxu0 0
        %954 = vmatprep.subr.bf16.mxu0 0
        %955 = vmatpush2.bf16.msra.mxu0 0
        %956 = vmatprep.subr.bf16.mxu0 0
        %957 = vmatpush2.bf16.msra.mxu0 0
        %958 = vmatprep.subr.bf16.mxu0 0
        %959 = vmatpush2.bf16.msra.mxu0 0
        %960 = vmatprep.mubr.bf16.mxu0 0
        %961 = vmatmul.mubr.bf16.gmra.mxu0 %v926
        %v962 = vpop.f32.mrf.mxu0
        %v963 = vadd.f32 0.0, %v962
        %v964 = vpop.f32.mrf.mxu0
        %v965 = vpop.f32.mrf.mxu0
        %v966 = vadd.f32 0.0, %v965
        %v967 = vpop.f32.mrf.mxu0
        %968 = vdwg.mxu0
        %971 = vrot.lane.b32.xlu0 %v713, 32
        %v972 = vpop.permute.xlu0 %971
        %973 = vrot.lane.b32.xlu0 %v716, 32
        %v974 = vpop.permute.xlu0 %973
        %979 = vrot.lane.b32.xlu0 %v838, 64
        %v980 = vpop.permute.xlu0 %979
        %981 = vrot.lane.b32.xlu0 %v841, 64
        %v982 = vpop.permute.xlu0 %981
        %987 = vrot.lane.b32.xlu0 %v963, 96
        %v988 = vpop.permute.xlu0 %987
        %989 = vrot.lane.b32.xlu0 %v966, 96
        %v990 = vpop.permute.xlu0 %989
        %v993 = vsel %vm471, %v585, %v972
        %v994 = vsel %vm471, %v588, %v974
        %vm995 = vcmask 523264
        %v996 = vsel %vm995, %v993, %v980
        %v997 = vsel %vm995, %v994, %v982
        %vm998 = vcmask 785408
        %v999 = vsel %vm998, %v996, %v988
        %v1000 = vsel %vm998, %v997, %v990
        %1001 = vst [vmem:[%s259] sm:$0xff] %v999
        %1002 = vst [vmem:[%s259 + $0x8] sm:$0xff] %v1000
        %s1003 = sand.u32 %s120, 1
        %s1004 = scalar_lea.sflag [#allocation4], %s1003
        %s1005 = sand.u32 %s120, 1
        %s1006 = smul.addr %s1005, 16
        %s1007 = scalar_lea.vmem [#allocation10], %s1006
        // Predicated region
        $region53: #{tpu_custom_call.1} parent=35 // pred_check
          %p1008 = pneg %p130
        $region54: #{tpu_custom_call.1} parent=35 // pred_check_branch
          %1010 = sbr.rel (%p1008) target = $region56
        $region55: #{tpu_custom_call.1} parent=35 // pred_region
          %s1012 = ssub.s32 256, 256
          %1013 = vsyncadd %s1004, %s1012
          %s1014 = smul.addr %s23, 2
          %s1015 = smul.addr %s1014, 128
          %s1016 = scalar_lea.hbm %s4, %s1015
          %s1017 = sshll.u32 %s1007, 4
          %s1018 = int_to_ptr.vmem [resolvable:$true] %s1017
          %1023 = dma.vmem_to_hbm [thread:$0]  %s1018, 256, %s1016, %s1004, 128, 128, 8
        $region56: #{tpu_custom_call.1} parent=35 // pred_fallthru
          _
      $region36: #{tpu_custom_call.1} parent=5 // pred_fallthru
        _
      %p1024 = scmp.le.s32.totalorder 2, %s18
      // Predicated region
      $region57: #{tpu_custom_call.1} parent=5 // pred_check
        %p1025 = pneg %p1024
      $region58: #{tpu_custom_call.1} parent=5 // pred_check_branch
        %1027 = sbr.rel (%p1025) target = $region60
      $region59: #{tpu_custom_call.1} parent=5 // pred_region
        %s1028 = ssub.s32 %s18, 2
        // Predicated region
        $region61: #{tpu_custom_call.1} parent=59 // pred_check
          %p1029 = pneg %p136
        $region62: #{tpu_custom_call.1} parent=59 // pred_check_branch
          %1031 = sbr.rel (%p1029) target = $region64
        $region63: #{tpu_custom_call.1} parent=59 // pred_region
          %s1032 = sand.u32 %s121, 1
          %s1033 = scalar_lea.sflag [#allocation4], %s1032
          %s1034 = sand.u32 %s121, 1
          %s1035 = smul.addr %s1034, 16
          %s1036 = scalar_lea.vmem [#allocation10], %s1035
          %1037 = dma.done %s1033, 256
        $region64: #{tpu_custom_call.1} parent=59 // pred_fallthru
          _
      $region60: #{tpu_custom_call.1} parent=5 // pred_fallthru
        _
    $region6: #{tpu_custom_call.1} parent=1 // loop_footer
      %s22 = sadd.s32 1, %s18
    $region7: #{tpu_custom_call.1} parent=1 // loop_footer_branch
      %17 = sbr.rel target = $region3
    $region8: #{tpu_custom_call.1} parent=1 // loop_exit
      _
    %1038 = vsyncpa [#allocation3], 1
    %s1039 = scalar_lea.sflag [#allocation3], 1
    %1040 = vsyncpa %s1039, 1
    %1041 = vsyncpa [#allocation6], 1
    %1042 = vsyncpa [#allocation9], 1
    %1043 = vsyncpa [#allocation4], 1
    %s1044 = scalar_lea.sflag [#allocation4], 1
    %1045 = vsyncpa %s1044, 1

</llo_original>
